<compile_context>
chip_gen: v5e
topology: v5e:2x2
jax: 0.10.0
libtpu: 0.0.40
codegen_flags: <defaults>
</compile_context>

<pallas_src>
import functools
import math

import jax
import jax.numpy as jnp
from jax import lax
from jax.experimental import pallas as pl
from jax.experimental.pallas import tpu as pltpu

LN_EPS = 1e-5


# ---------------------------------------------------------------------------
# small helpers (usable both inside kernels and in the plain-JAX reference)
# ---------------------------------------------------------------------------

def _layernorm_f32(x, gamma, beta, eps=LN_EPS):
    mu = jnp.mean(x, axis=-1, keepdims=True)
    xc = x - mu
    var = jnp.mean(xc * xc, axis=-1, keepdims=True)
    return xc * lax.rsqrt(var + eps) * gamma + beta


def _gelu_tanh(x):
    c = math.sqrt(2.0 / math.pi)
    return 0.5 * x * (1.0 + jnp.tanh(c * (x + 0.044715 * x * x * x)))


def _vmem_limit(estimate_bytes):
    cap = 128 * 1024 * 1024
    try:
        cap = int(pltpu.get_tpu_info().vmem_capacity_bytes)
    except Exception:
        pass
    cap = int(0.9 * cap)                      # leave headroom below physical VMEM
    want = int(1.5 * estimate_bytes)
    floor = min(32 * 1024 * 1024, cap)
    return max(min(want, cap), floor)


def _full_vmem_spec():
    # Whole array resident in VMEM for the kernel's lifetime: a single copy,
    # no per-grid-step double-buffering of constant weights/biases.
    return pl.BlockSpec(memory_space=pltpu.MemorySpace.VMEM)


def _seq_spec(n, c):
    # (B, n, c) array: one batch element per grid step, batch dim squeezed away.
    return pl.BlockSpec((None, n, c), lambda b: (b, 0, 0))


# ---------------------------------------------------------------------------
# kernels
# ---------------------------------------------------------------------------

def _patch_embed_kernel(xp_ref, w_ref, b_ref, pos_ref, o_ref):
    y = jnp.dot(xp_ref[...], w_ref[...], preferred_element_type=jnp.float32)
    o_ref[...] = (y + b_ref[...] + pos_ref[...]).astype(o_ref.dtype)


def _vit_block_kernel(x_ref, g1_ref, bt1_ref, wqkv_ref, bqkv_ref, wo_ref, bo_ref,
                      g2_ref, bt2_ref, w1_ref, b1_ref, w2_ref, b2_ref,
                      gf_ref, bf_ref,
                      o_ref,
                      qkv_ref, pv_ref, res_ref,
                      *, num_heads, dp, compute_dtype, final_ln):
    f32 = jnp.float32
    approx = compute_dtype != jnp.float32      # exact reciprocal in validation mode
    ew_dtype = compute_dtype                   # exp/tanh dtype (bf16 EUP on v6e/v7x)

    # ---- LN1 + merged (all heads, lane-padded) QKV projection -> VMEM scratch
    xn = _layernorm_f32(x_ref[...].astype(f32),
                        g1_ref[...], bt1_ref[...]).astype(compute_dtype)
    qkv_ref[...] = (jnp.dot(xn, wqkv_ref[...], preferred_element_type=f32)
                    + bqkv_ref[...]).astype(compute_dtype)

    # ---- per-head attention. Static (unrolled) head offsets -> 128-aligned lane
    #      slices on the scratch refs; PV results stored, no (N,C) f32 RMW per head.
    for h in range(num_heads):
        base = 3 * h * dp
        q = qkv_ref[:, base:base + dp]                 # (N, dp), Q pre-scaled
        k = qkv_ref[:, base + dp:base + 2 * dp]        # (N, dp)
        v = qkv_ref[:, base + 2 * dp:base + 3 * dp]    # (N, dp)

        # q @ k^T as a contraction on the head dim (no materialized k.T)
        s = lax.dot_general(q, k, (((1,), (1,)), ((), ())),
                            preferred_element_type=f32)            # (N, N)
        m = jnp.max(s, axis=-1, keepdims=True)
        p = jnp.exp((s - m).astype(ew_dtype))
        denom = jnp.sum(p, axis=-1, keepdims=True, dtype=f32)

        pv = jnp.dot(p.astype(compute_dtype), v,
                     preferred_element_type=f32)                    # (N, dp)
        pv = pv * pl.reciprocal(denom, approx=approx)
        pv_ref[:, h * dp:(h + 1) * dp] = pv.astype(compute_dtype)

    # ---- single output projection over all heads + residual (x_ref re-read)
    attn = jnp.dot(pv_ref[...], wo_ref[...],
                   preferred_element_type=f32) + bo_ref[...]        # (N, C)
    res_ref[...] = x_ref[...].astype(f32) + attn

    # ---- LN2 + MLP (GELU tanh) + residual
    xn2 = _layernorm_f32(res_ref[...], g2_ref[...], bt2_ref[...]).astype(compute_dtype)
    h1 = jnp.dot(xn2, w1_ref[...], preferred_element_type=f32) + b1_ref[...]
    g = _gelu_tanh(h1.astype(ew_dtype)).astype(compute_dtype)
    y = jnp.dot(g, w2_ref[...], preferred_element_type=f32) + b2_ref[...]
    out = res_ref[...] + y

    if final_ln:
        out = _layernorm_f32(out, gf_ref[...], bf_ref[...])
    o_ref[...] = out.astype(o_ref.dtype)


# ---------------------------------------------------------------------------
# pallas_call wrappers
# ---------------------------------------------------------------------------

def patch_embed_forward(xp, w_pe, b_pe, pos, compute_dtype):
    B, N, P = xp.shape
    D = w_pe.shape[1]
    cd = jnp.dtype(compute_dtype).itemsize
    est = (2 * N * P * xp.dtype.itemsize + 2 * N * D * cd
           + w_pe.nbytes + b_pe.nbytes + pos.nbytes + 2 * N * D * 4)
    return pl.pallas_call(
        _patch_embed_kernel,
        out_shape=jax.ShapeDtypeStruct((B, N, D), compute_dtype),
        grid=(B,),
        in_specs=[_seq_spec(N, P), _full_vmem_spec(), _full_vmem_spec(),
                  _full_vmem_spec()],
        out_specs=_seq_spec(N, D),
        compiler_params=pltpu.CompilerParams(
            dimension_semantics=("parallel",),
            vmem_limit_bytes=_vmem_limit(est)),
    )(xp, w_pe, b_pe, pos)


def vit_block_forward(x, blk, gf, bf, *, num_heads, compute_dtype, final_ln):
    B, N, C = x.shape
    dp = blk["wo"].shape[0] // num_heads
    Hm = blk["w1"].shape[-1]
    cd = jnp.dtype(compute_dtype).itemsize
    out_dtype = jnp.float32 if final_ln else compute_dtype

    weights = (blk["g1"], blk["bt1"], blk["wqkv"], blk["bqkv"], blk["wo"],
               blk["bo"], blk["g2"], blk["bt2"], blk["w1"], blk["b1"],
               blk["w2"], blk["b2"], gf, bf)
    w_bytes = sum(int(w.size) * w.dtype.itemsize for w in weights)
    est = (2 * N * C * cd * 2 + 2 * N * C * 4          # in/out blocks (pipelined)
           + w_bytes                                   # single-buffered weights
           + N * 3 * num_heads * dp * cd               # qkv scratch
           + N * num_heads * dp * cd                   # pv scratch
           + N * C * 4                                 # residual scratch
           + 2 * N * N * 4 + N * Hm * 4 + 2 * N * C * 4)  # score/MLP spill headroom

    kernel = functools.partial(_vit_block_kernel, num_heads=num_heads, dp=dp,
                               compute_dtype=compute_dtype, final_ln=final_ln)
    return pl.pallas_call(
        kernel,
        out_shape=jax.ShapeDtypeStruct((B, N, C), out_dtype),
        grid=(B,),
        in_specs=[_seq_spec(N, C)] + [_full_vmem_spec()] * len(weights),
        out_specs=_seq_spec(N, C),
        scratch_shapes=[
            pltpu.VMEM((N, 3 * num_heads * dp), compute_dtype),   # merged QKV
            pltpu.VMEM((N, num_heads * dp), compute_dtype),       # per-head PV
            pltpu.VMEM((N, C), jnp.float32),                      # mid-block residual
        ],
        compiler_params=pltpu.CompilerParams(
            dimension_semantics=("parallel",),
            vmem_limit_bytes=_vmem_limit(est)),
    )(x, *weights)


# ---------------------------------------------------------------------------
# parameter preparation (PyTorch layout -> kernel layout) and full forward
# ---------------------------------------------------------------------------

def prepare_params(params, num_heads, compute_dtype):
    """Call ONCE at model load; returns kernel-ready (transposed/padded/cast) weights."""
    C = params["pos"].shape[-1]
    H = num_heads
    d = C // H
    dp = ((d + 127) // 128) * 128            # pad head_dim to a 128-lane multiple
    scale = 1.0 / math.sqrt(d)               # folded into the Q projection

    blocks = []
    for blk in params["blocks"]:
        # Merged QKV weight (C, 3*H*dp); per-head column layout [q_h | k_h | v_h].
        w3 = blk["wqkv"].reshape(3, H, d, C)
        w3 = w3.at[0].multiply(scale)                         # fold q-scale
        w3 = jnp.transpose(w3, (1, 0, 2, 3))                  # (H, 3, d, C)
        w3 = jnp.pad(w3, ((0, 0), (0, 0), (0, dp - d), (0, 0)))
        wqkv = jnp.transpose(w3, (3, 0, 1, 2)).reshape(C, H * 3 * dp)

        b3 = blk["bqkv"].reshape(3, H, d)
        b3 = b3.at[0].multiply(scale)
        b3 = jnp.transpose(b3, (1, 0, 2))                     # (H, 3, d)
        b3 = jnp.pad(b3, ((0, 0), (0, 0), (0, dp - d)))
        bqkv = b3.reshape(1, H * 3 * dp)

        # Head-split output projection (H*dp, C); padded rows are zero.
        wo = blk["wproj"].T.reshape(H, d, C)
        wo = jnp.pad(wo, ((0, 0), (0, dp - d), (0, 0))).reshape(H * dp, C)

        blocks.append(dict(
            g1=blk["g1"].reshape(1, C).astype(jnp.float32),
            bt1=blk["bt1"].reshape(1, C).astype(jnp.float32),
            wqkv=wqkv.astype(compute_dtype),
            bqkv=bqkv.astype(jnp.float32),
            wo=wo.astype(compute_dtype),
            bo=blk["bproj"].reshape(1, C).astype(jnp.float32),
            g2=blk["g2"].reshape(1, C).astype(jnp.float32),
            bt2=blk["bt2"].reshape(1, C).astype(jnp.float32),
            w1=blk["w1"].T.astype(compute_dtype),
            b1=blk["b1"].reshape(1, -1).astype(jnp.float32),
            w2=blk["w2"].T.astype(compute_dtype),
            b2=blk["b2"].reshape(1, C).astype(jnp.float32),
        ))
    return dict(
        w_pe=params["w_pe"].T.astype(compute_dtype),
        b_pe=params["b_pe"].reshape(1, -1).astype(jnp.float32),
        pos=params["pos"][0].astype(jnp.float32),
        gf=params["gf"].reshape(1, C).astype(jnp.float32),
        bf=params["bf"].reshape(1, C).astype(jnp.float32),
        blocks=blocks,
    )


def encoder_forward(x_img, prep, *, num_heads, patch=(14, 14),
                    compute_dtype=jnp.bfloat16):
    """Full EncoderWrapper forward on pre-prepared params (prepare_params)."""
    p1, p2 = patch
    B, c, hp1, wp2 = x_img.shape
    h, w = hp1 // p1, wp2 // p2
    # LinearPatchEmbedding reshape/permute (pure layout, wrapper glue).
    xp = x_img.reshape(B, c, h, p1, w, p2)
    xp = jnp.transpose(xp, (0, 2, 4, 1, 3, 5)).reshape(B, h * w, c * p1 * p2)
    xp = xp.astype(compute_dtype)

    x = patch_embed_forward(xp, prep["w_pe"], prep["b_pe"], prep["pos"],
                            compute_dtype)
    nblk = len(prep["blocks"])
    for i, blk in enumerate(prep["blocks"]):
        x = vit_block_forward(x, blk, prep["gf"], prep["bf"],
                              num_heads=num_heads, compute_dtype=compute_dtype,
                              final_ln=(i == nblk - 1))
    return x


# ---------------------------------------------------------------------------
# plain-JAX reference (mirrors the PyTorch forward exactly) and init
# ---------------------------------------------------------------------------

def encoder_reference(x_img, params, *, num_heads, patch=(14, 14), eps=LN_EPS):
    p1, p2 = patch
    B, c, hp1, wp2 = x_img.shape
    h, w = hp1 // p1, wp2 // p2
    x = x_img.reshape(B, c, h, p1, w, p2)
    x = x.transpose(0, 2, 4, 1, 3, 5).reshape(B, h * w, c * p1 * p2)
    x = x @ params["w_pe"].T + params["b_pe"]
    x = x + params["pos"]
    C = x.shape[-1]
    d = C // num_heads

    def ln(z, g, b):
        mu = z.mean(-1, keepdims=True)
        var = ((z - mu) ** 2).mean(-1, keepdims=True)
        return (z - mu) / jnp.sqrt(var + eps) * g + b

    for blk in params["blocks"]:
        Bc, N, _ = x.shape
        xn = ln(x, blk["g1"], blk["bt1"])
        qkv = xn @ blk["wqkv"].T + blk["bqkv"]
        qkv = qkv.reshape(Bc, N, 3, num_heads, d).transpose(2, 0, 3, 1, 4)
        q, k, v = qkv[0], qkv[1], qkv[2]
        s = jnp.einsum("bhnd,bhmd->bhnm", q, k) / math.sqrt(d)
        p = jax.nn.softmax(s, axis=-1)
        o = jnp.einsum("bhnm,bhmd->bhnd", p, v)
        o = o.transpose(0, 2, 1, 3).reshape(Bc, N, C)
        x = x + o @ blk["wproj"].T + blk["bproj"]
        xn2 = ln(x, blk["g2"], blk["bt2"])
        hdn = xn2 @ blk["w1"].T + blk["b1"]
        x = x + _gelu_tanh(hdn) @ blk["w2"].T + blk["b2"]
    return ln(x, params["gf"], params["bf"])


def init_params(key, *, channels, patch, num_patches, embed_dim, num_heads,
                mlp_hidden, depth):
    del num_heads  # layout only depends on embed_dim
    p1, p2 = patch
    patch_dim = channels * p1 * p2
    C, Hm = embed_dim, mlp_hidden

    def kaiming(k, out_f, in_f):   # kaiming_normal_(fan_in, relu)
        return math.sqrt(2.0 / in_f) * jax.random.normal(k, (out_f, in_f),
                                                         jnp.float32)

    def unif_bias(k, in_f, out_f):  # nn.Linear default bias init
        bound = 1.0 / math.sqrt(in_f)
        return jax.random.uniform(k, (out_f,), jnp.float32, -bound, bound)

    keys = iter(jax.random.split(key, 6 + 14 * depth))
    params = {
        "w_pe": kaiming(next(keys), C, patch_dim),
        "b_pe": unif_bias(next(keys), patch_dim, C),
        "pos": 0.02 * jax.random.normal(next(keys), (1, num_patches, C),
                                        jnp.float32),
        "gf": 1.0 + 0.1 * jax.random.normal(next(keys), (C,), jnp.float32),
        "bf": 0.1 * jax.random.normal(next(keys), (C,), jnp.float32),
        "blocks": [],
    }
    for _ in range(depth):
        params["blocks"].append({
            "g1": 1.0 + 0.1 * jax.random.normal(next(keys), (C,), jnp.float32),
            "bt1": 0.1 * jax.random.normal(next(keys), (C,), jnp.float32),
            "wqkv": kaiming(next(keys), 3 * C, C),
            "bqkv": unif_bias(next(keys), C, 3 * C),
            "wproj": kaiming(next(keys), C, C),
            "bproj": unif_bias(next(keys), C, C),
            "g2": 1.0 + 0.1 * jax.random.normal(next(keys), (C,), jnp.float32),
            "bt2": 0.1 * jax.random.normal(next(keys), (C,), jnp.float32),
            "w1": kaiming(next(keys), Hm, C),
            "b1": unif_bias(next(keys), C, Hm),
            "w2": kaiming(next(keys), C, Hm),
            "b2": unif_bias(next(keys), Hm, C),
        })
    return params


if __name__ == "__main__":
    # Small shapes, structurally consistent with the module:
    # 14x14 patches (like LinearPatchEmbedding), small embed dim / depth.
    B, channels = 2, 3
    patch = (14, 14)
    img_hw = 56                     # -> 4x4 = 16 patches
    embed_dim, num_heads = 64, 4    # head_dim = 16 (zero-padded to 128 lanes)
    mlp_hidden, depth = 128, 2

    key = jax.random.PRNGKey(0)
    k_img, k_par = jax.random.split(key)
    x_img = jax.random.normal(k_img, (B, channels, img_hw, img_hw), jnp.float32)
    num_patches = (img_hw // patch[0]) * (img_hw // patch[1])
    params = init_params(k_par, channels=channels, patch=patch,
                         num_patches=num_patches, embed_dim=embed_dim,
                         num_heads=num_heads, mlp_hidden=mlp_hidden, depth=depth)

    with jax.default_matmul_precision("highest"):
        ref = jax.block_until_ready(
            encoder_reference(x_img, params, num_heads=num_heads, patch=patch))

    # f32 compute path: tight functional check of the kernel math.
    prep_f32 = prepare_params(params, num_heads, jnp.float32)
    out_f32 = jax.block_until_ready(
        encoder_forward(x_img, prep_f32, num_heads=num_heads, patch=patch,
                        compute_dtype=jnp.float32))
    assert out_f32.shape == ref.shape
    assert jnp.allclose(out_f32, ref, atol=2e-2, rtol=2e-2), "f32 kernel mismatch"

    # bf16 compute path (the performance configuration): loose check.
    prep_bf16 = prepare_params(params, num_heads, jnp.bfloat16)
    out_bf16 = jax.block_until_ready(
        encoder_forward(x_img, prep_bf16, num_heads=num_heads, patch=patch,
                        compute_dtype=jnp.bfloat16))
    assert jnp.allclose(out_bf16.astype(jnp.float32), ref,
                        atol=1e-1, rtol=1e-1), "bf16 kernel mismatch"

    print("KERNEL_OK")
</pallas_src>

<mosaic_0001>
module attributes {stable_mosaic.version = 11 : i64} {
  func.func @_patch_embed_kernel(%arg0: i32, %arg1: memref<1x16x588xf32, #tpu.memory_space<vmem>>, %arg2: memref<588x64xf32, #tpu.memory_space<vmem>>, %arg3: memref<1x64xf32, #tpu.memory_space<vmem>>, %arg4: memref<16x64xf32, #tpu.memory_space<vmem>>, %arg5: memref<1x16x64xf32, #tpu.memory_space<vmem>>) attributes {dimension_semantics = [#tpu.dimension_semantics<parallel>], iteration_bounds = array<i64: 2>, scalar_prefetch = 0 : i64, scratch_operands = 0 : i64, tpu.core_type = #tpu.core_type<tc>, window_params = [{transform_indices = @transform_0, window_bounds = array<i64: 1, 16, 588>}, {pipeline_mode = #tpu.pipeline_mode<synchronous>, transform_indices = @transform_1, window_bounds = array<i64: 588, 64>}, {pipeline_mode = #tpu.pipeline_mode<synchronous>, transform_indices = @transform_2, window_bounds = array<i64: 1, 64>}, {pipeline_mode = #tpu.pipeline_mode<synchronous>, transform_indices = @transform_3, window_bounds = array<i64: 16, 64>}, {transform_indices = @transform_4, window_bounds = array<i64: 1, 16, 64>}]} {
    %c0 = arith.constant 0 : index
    %c0_0 = arith.constant 0 : index
    %c0_1 = arith.constant 0 : index
    %0 = vector.load %arg1[%c0, %c0_0, %c0_1] : memref<1x16x588xf32, #tpu.memory_space<vmem>>, vector<1x16x588xf32>
    %1 = vector.shape_cast %0 : vector<1x16x588xf32> to vector<16x588xf32>
    %c0_2 = arith.constant 0 : index
    %c0_3 = arith.constant 0 : index
    %2 = vector.load %arg2[%c0_2, %c0_3] : memref<588x64xf32, #tpu.memory_space<vmem>>, vector<588x64xf32>
    %cst = arith.constant dense<0.000000e+00> : vector<16x64xf32>
    %3 = tpu.matmul %1, %2, %cst {dimension_numbers = #tpu.dot_dimension_numbers<[1], [0], [0], [1], [0, 0, 1, 1], [], []>} : vector<16x588xf32>, vector<588x64xf32>, vector<16x64xf32> -> vector<16x64xf32>
    %c0_4 = arith.constant 0 : index
    %c0_5 = arith.constant 0 : index
    %4 = vector.load %arg3[%c0_4, %c0_5] : memref<1x64xf32, #tpu.memory_space<vmem>>, vector<1x64xf32>
    %5 = vector.broadcast %4 : vector<1x64xf32> to vector<16x64xf32>
    %6 = arith.addf %3, %5 : vector<16x64xf32>
    %c0_6 = arith.constant 0 : index
    %c0_7 = arith.constant 0 : index
    %7 = vector.load %arg4[%c0_6, %c0_7] : memref<16x64xf32, #tpu.memory_space<vmem>>, vector<16x64xf32>
    %8 = arith.addf %6, %7 : vector<16x64xf32>
    %c0_8 = arith.constant 0 : index
    %c0_9 = arith.constant 0 : index
    %c0_10 = arith.constant 0 : index
    %9 = vector.load %arg5[%c0_8, %c0_9, %c0_10] : memref<1x16x64xf32, #tpu.memory_space<vmem>>, vector<1x16x64xf32>
    %10 = vector.shape_cast %9 : vector<1x16x64xf32> to vector<16x64xf32>
    %11 = vector.shape_cast %8 : vector<16x64xf32> to vector<1x16x64xf32>
    tpu.vector_store %arg5[%c0_8, %c0_9, %c0_10], %11 {strides = array<i32>} : memref<1x16x64xf32, #tpu.memory_space<vmem>>, vector<1x16x64xf32>,
    return
  }
  func.func @transform_0(%arg0: i32) -> (i32, i32, i32) {
    %c0_i32 = arith.constant 0 : i32
    %c0_i32_0 = arith.constant 0 : i32
    %c0_i32_1 = arith.constant 0 : i32
    return %arg0, %c0_i32, %c0_i32_0 : i32, i32, i32
  }
  func.func @transform_1(%arg0: i32) -> (i32, i32) {
    %c0_i32 = arith.constant 0 : i32
    %c0_i32_0 = arith.constant 0 : i32
    %c0_i32_1 = arith.constant 0 : i32
    return %c0_i32, %c0_i32_0 : i32, i32
  }
  func.func @transform_2(%arg0: i32) -> (i32, i32) {
    %c0_i32 = arith.constant 0 : i32
    %c0_i32_0 = arith.constant 0 : i32
    %c0_i32_1 = arith.constant 0 : i32
    return %c0_i32, %c0_i32_0 : i32, i32
  }
  func.func @transform_3(%arg0: i32) -> (i32, i32) {
    %c0_i32 = arith.constant 0 : i32
    %c0_i32_0 = arith.constant 0 : i32
    %c0_i32_1 = arith.constant 0 : i32
    return %c0_i32, %c0_i32_0 : i32, i32
  }
  func.func @transform_4(%arg0: i32) -> (i32, i32, i32) {
    %c0_i32 = arith.constant 0 : i32
    %c0_i32_0 = arith.constant 0 : i32
    %c0_i32_1 = arith.constant 0 : i32
    return %arg0, %c0_i32, %c0_i32_0 : i32, i32, i32
  }
}

</mosaic_0001>

<llo_original>
// kernel: tpu_custom_call.1
$region0: #{tpu_custom_call.1}
  #allocation0 [shape = 'u32[]', space=smem, size = 0x4, offset = 0x4, fixed_abs, tag = 'smem constant byte address 0x4 - core index']
  #allocation1 [shape = 'u32[72,128]{1,0:T(1,128)}', space=vmem, size = 0x9000, scoped, tag = 'internal scratch']
  %s0 = inlined_call_operand.vmem [shape: f32[2,16,588], index: 0, kind: input, shape index: {}]
  %s1 = inlined_call_operand.vmem [shape: f32[588,64], index: 1, kind: input, shape index: {}]
  %s2 = inlined_call_operand.vmem [shape: f32[1,64], index: 2, kind: input, shape index: {}]
  %s3 = inlined_call_operand.vmem [shape: f32[16,64], index: 3, kind: input, shape index: {}]
  %s4 = inlined_call_operand.hbm [shape: f32[2,16,64], index: 4, kind: output, shape index: {}]
  %s5 = sld [smem:[#allocation0]]
  $region49: #{tpu_custom_call.1} parent=0
    _
  %s7 = ssub.s32 1, %s5
  %s8 = scalar_select 0, %s7, %s5
  $region1: #{tpu_custom_call.1} parent=0
    #allocation2 [shape = 'u8[16384]{0}', space=vmem, size = 0x4000, scoped, tag = 'output window, operand 0']
    #allocation3 [shape = 's32[2]{0}', space=sflag, size = 0x8, scoped, tag = 'scoped memory for tpu_custom_call.1']
    %9 = vsyncpa [#allocation3], 0
    %s10 = scalar_lea.sflag [#allocation3], 1
    %11 = vsyncpa %s10, 0
    loop: start=0, step=1, limit=4
    $region2: #{tpu_custom_call.1} parent=1 // loop_pre_header
      _
    $region3: #{tpu_custom_call.1} parent=1 // loop_header
      %s13 = sphi 0, %s17
      %p14 = scmp.ge.s32.totalorder %s13, 4
      %s23 = sphi 0, %s25
      %s26 = sphi 0, %s23
      %s27 = sphi 0, %s26
      %s43 = sphi 0, %s27
      %s47 = sphi 0, %s47
      %s49 = sphi 0, %s47
      %s50 = sphi 0, %s49
      %s64 = sphi 0, %s50
      %s68 = sphi 0, %s68
      %s70 = sphi 0, %s68
      %s71 = sphi 0, %s70
      %s85 = sphi 0, %s71
      %s89 = sphi 0, %s89
      %s91 = sphi 0, %s89
      %s92 = sphi 0, %s91
      %s106 = sphi 0, %s92
      %s112 = sphi 0, %s114
      %s115 = sphi 0, %s112
      %s116 = sphi 0, %s115
      %s132 = sphi 0, %s116
    $region4: #{tpu_custom_call.1} parent=1 // loop_header_branch
      %16 = sbr.rel (%p14) target = $region8
    $region5: #{tpu_custom_call.1} parent=1 // loop_body
      %s18 = ssub.s32 %s13, 1
      %s19 = ssub.s32 %s13, 2
      %s20 = sadd.s32 %s13, 1
      %s21 = ssub.s32 %s13, %s20
      %p22 = scmp.eq.s32.totalorder %s21, 0
      %s24 = sadd.s32 %s23, 1
      %s25 = scalar_select %p22, %s23, %s24
      %p28 = pneg %p22
      %p29 = scmp.eq.s32.totalorder %s13, 1
      %p30 = por %p28, %p29
      %p31 = scmp.ne.s32.totalorder %s23, %s26
      %p32 = scmp.eq.s32.totalorder %s13, 0
      %p33 = por %p31, %p32
      %p34 = scmp.ne.s32.totalorder %s23, %s26
      %p35 = scmp.eq.s32.totalorder %s18, 1
      %p36 = por %p34, %p35
      %p37 = scmp.ne.s32.totalorder %s26, %s27
      %p38 = scmp.eq.s32.totalorder %s18, 0
      %p39 = por %p37, %p38
      %p40 = scmp.ne.s32.totalorder %s26, %s27
      %p41 = scmp.eq.s32.totalorder %s19, 1
      %p42 = por %p40, %p41
      %p44 = scmp.ne.s32.totalorder %s27, %s43
      %p45 = scmp.eq.s32.totalorder %s19, 0
      %p46 = por %p44, %p45
      %s48 = sadd.s32 %s47, 1
      %p51 = scmp.eq.s32.totalorder %s13, 1
      %p52 = scmp.ne.s32.totalorder %s47, %s49
      %p53 = scmp.eq.s32.totalorder %s13, 0
      %p54 = por %p52, %p53
      %p55 = scmp.ne.s32.totalorder %s47, %s49
      %p56 = scmp.eq.s32.totalorder %s18, 1
      %p57 = por %p55, %p56
      %p58 = scmp.ne.s32.totalorder %s49, %s50
      %p59 = scmp.eq.s32.totalorder %s18, 0
      %p60 = por %p58, %p59
      %p61 = scmp.ne.s32.totalorder %s49, %s50
      %p62 = scmp.eq.s32.totalorder %s19, 1
      %p63 = por %p61, %p62
      %p65 = scmp.ne.s32.totalorder %s50, %s64
      %p66 = scmp.eq.s32.totalorder %s19, 0
      %p67 = por %p65, %p66
      %s69 = sadd.s32 %s68, 1
      %p72 = scmp.eq.s32.totalorder %s13, 1
      %p73 = scmp.ne.s32.totalorder %s68, %s70
      %p74 = scmp.eq.s32.totalorder %s13, 0
      %p75 = por %p73, %p74
      %p76 = scmp.ne.s32.totalorder %s68, %s70
      %p77 = scmp.eq.s32.totalorder %s18, 1
      %p78 = por %p76, %p77
      %p79 = scmp.ne.s32.totalorder %s70, %s71
      %p80 = scmp.eq.s32.totalorder %s18, 0
      %p81 = por %p79, %p80
      %p82 = scmp.ne.s32.totalorder %s70, %s71
      %p83 = scmp.eq.s32.totalorder %s19, 1
      %p84 = por %p82, %p83
      %p86 = scmp.ne.s32.totalorder %s71, %s85
      %p87 = scmp.eq.s32.totalorder %s19, 0
      %p88 = por %p86, %p87
      %s90 = sadd.s32 %s89, 1
      %p93 = scmp.eq.s32.totalorder %s13, 1
      %p94 = scmp.ne.s32.totalorder %s89, %s91
      %p95 = scmp.eq.s32.totalorder %s13, 0
      %p96 = por %p94, %p95
      %p97 = scmp.ne.s32.totalorder %s89, %s91
      %p98 = scmp.eq.s32.totalorder %s18, 1
      %p99 = por %p97, %p98
      %p100 = scmp.ne.s32.totalorder %s91, %s92
      %p101 = scmp.eq.s32.totalorder %s18, 0
      %p102 = por %p100, %p101
      %p103 = scmp.ne.s32.totalorder %s91, %s92
      %p104 = scmp.eq.s32.totalorder %s19, 1
      %p105 = por %p103, %p104
      %p107 = scmp.ne.s32.totalorder %s92, %s106
      %p108 = scmp.eq.s32.totalorder %s19, 0
      %p109 = por %p107, %p108
      %s110 = ssub.s32 %s13, %s20
      %p111 = scmp.eq.s32.totalorder %s110, 0
      %s113 = sadd.s32 %s112, 1
      %s114 = scalar_select %p111, %s112, %s113
      %p117 = pneg %p111
      %p118 = scmp.eq.s32.totalorder %s13, 1
      %p119 = por %p117, %p118
      %p120 = scmp.ne.s32.totalorder %s112, %s115
      %p121 = scmp.eq.s32.totalorder %s13, 0
      %p122 = por %p120, %p121
      %p123 = scmp.ne.s32.totalorder %s112, %s115
      %p124 = scmp.eq.s32.totalorder %s18, 1
      %p125 = por %p123, %p124
      %p126 = scmp.ne.s32.totalorder %s115, %s116
      %p127 = scmp.eq.s32.totalorder %s18, 0
      %p128 = por %p126, %p127
      %p129 = scmp.ne.s32.totalorder %s115, %s116
      %p130 = scmp.eq.s32.totalorder %s19, 1
      %p131 = por %p129, %p130
      %p133 = scmp.ne.s32.totalorder %s116, %s132
      %p134 = scmp.eq.s32.totalorder %s19, 0
      %p135 = por %p133, %p134
      %p136 = scmp.le.s32.totalorder 1, %s13
      %p137 = scmp.lt.s32.totalorder %s13, 3
      %p138 = pnand %p136, %p137
      %p139 = pneg %p138
      // Predicated region
      $region9: #{tpu_custom_call.1} parent=5 // pred_check
        _
      $region10: #{tpu_custom_call.1} parent=5 // pred_check_branch
        %141 = sbr.rel (%p138) target = $region12
      $region11: #{tpu_custom_call.1} parent=5 // pred_region
        %s142 = ssub.s32 %s13, 1
        // Predicated region
        $region13: #{tpu_custom_call.1} parent=11 // pred_check
          %p143 = pneg %p60
        $region14: #{tpu_custom_call.1} parent=11 // pred_check_branch
          %145 = sbr.rel (%p143) target = $region16
        $region15: #{tpu_custom_call.1} parent=11 // pred_region
          _
        $region16: #{tpu_custom_call.1} parent=11 // pred_fallthru
          _
        // Predicated region
        $region17: #{tpu_custom_call.1} parent=11 // pred_check
          %p146 = pneg %p81
        $region18: #{tpu_custom_call.1} parent=11 // pred_check_branch
          %148 = sbr.rel (%p146) target = $region20
        $region19: #{tpu_custom_call.1} parent=11 // pred_region
          _
        $region20: #{tpu_custom_call.1} parent=11 // pred_fallthru
          _
        // Predicated region
        $region21: #{tpu_custom_call.1} parent=11 // pred_check
          %p149 = pneg %p102
        $region22: #{tpu_custom_call.1} parent=11 // pred_check_branch
          %151 = sbr.rel (%p149) target = $region24
        $region23: #{tpu_custom_call.1} parent=11 // pred_region
          _
        $region24: #{tpu_custom_call.1} parent=11 // pred_fallthru
          _
      $region12: #{tpu_custom_call.1} parent=5 // pred_fallthru
        _
      %p152 = scmp.lt.s32.totalorder %s13, 2
      // Predicated region
      $region25: #{tpu_custom_call.1} parent=5 // pred_check
        %p153 = pneg %p152
      $region26: #{tpu_custom_call.1} parent=5 // pred_check_branch
        %155 = sbr.rel (%p153) target = $region28
      $region27: #{tpu_custom_call.1} parent=5 // pred_region
        // Predicated region
        $region29: #{tpu_custom_call.1} parent=27 // pred_check
          %p156 = pneg %p33
        $region30: #{tpu_custom_call.1} parent=27 // pred_check_branch
          %158 = sbr.rel (%p156) target = $region32
        $region31: #{tpu_custom_call.1} parent=27 // pred_region
          %p159 = scmp.lt.s32.totalorder %s13, 1
          %s160 = scalar_select %p159, %s13, 1
          %s161 = smul.addr %s160, 10
          %s162 = smul.addr %s161, 8
          %s163 = scalar_lea.vmem %s0, %s162
        $region32: #{tpu_custom_call.1} parent=27 // pred_fallthru
          _
      $region28: #{tpu_custom_call.1} parent=5 // pred_fallthru
        _
      %p164 = scmp.le.s32.totalorder 1, %s13
      %p165 = scmp.lt.s32.totalorder %s13, 3
      %p166 = pnand %p164, %p165
      %p167 = pneg %p166
      // Predicated region
      $region33: #{tpu_custom_call.1} parent=5 // pred_check
        _
      $region34: #{tpu_custom_call.1} parent=5 // pred_check_branch
        %169 = sbr.rel (%p166) target = $region36
      $region35: #{tpu_custom_call.1} parent=5 // pred_region
        %s170 = ssub.s32 %s13, 1
        %p171 = scmp.lt.s32.totalorder %s18, 1
        %s172 = scalar_select %p171, %s18, 1
        %s173 = smul.addr %s172, 10
        %s174 = smul.addr %s173, 8
        %s175 = scalar_lea.vmem %s0, %s174
        %p176 = pneg %p39
        %p177 = pneg %p36
        %p178 = pneg %p60
        %p179 = pneg %p57
        %p180 = pneg %p81
        %p181 = pneg %p78
        %p182 = pneg %p102
        %p183 = pneg %p99
        %p184 = pneg %p128
        %p185 = pneg %p125
        %s186 = sand.u32 %s115, 1
        %s187 = scalar_lea.sflag [#allocation3], %s186
        %s188 = sand.u32 %s115, 1
        %s189 = smul.addr %s188, 16
        %s190 = scalar_lea.vmem [#allocation2], %s189
        %p191 = scmp.lt.s32.totalorder %s18, 1
        %s192 = scalar_select %p191, %s18, 1
        %s193 = smul.addr %s192, 10
        %s194 = smul.addr %s193, 8
        %s195 = scalar_lea.vmem %s0, %s194
        %v196 = vld [vmem:[%s195] sm:$0xff]
        %v197 = vld [vmem:[%s195 + $0x8] sm:$0xff]
        %v198 = vld [vmem:[%s195 + $0x10] sm:$0xff]
        %v199 = vld [vmem:[%s195 + $0x18] sm:$0xff]
        %v200 = vld [vmem:[%s195 + $0x20] sm:$0xff]
        %v201 = vld [vmem:[%s195 + $0x28] sm:$0xff]
        %v202 = vld [vmem:[%s195 + $0x30] sm:$0xff]
        %v203 = vld [vmem:[%s195 + $0x38] sm:$0xff]
        %v204 = vld [vmem:[%s195 + $0x40] sm:$0xff]
        %v205 = vld [vmem:[%s195 + $0x48] sm:$0xff]
        %v206 = vld [vmem:[%s1] sm:$0xff]
        %v207 = vld [vmem:[%s1 + $0x8] sm:$0xff]
        %v208 = vld [vmem:[%s1 + $0x10] sm:$0xff]
        %v209 = vld [vmem:[%s1 + $0x18] sm:$0xff]
        %v210 = vld [vmem:[%s1 + $0x20] sm:$0xff]
        %v211 = vld [vmem:[%s1 + $0x28] sm:$0xff]
        %v212 = vld [vmem:[%s1 + $0x30] sm:$0xff]
        %v213 = vld [vmem:[%s1 + $0x38] sm:$0xff]
        %v214 = vld [vmem:[%s1 + $0x40] sm:$0xff]
        %v215 = vld [vmem:[%s1 + $0x48] sm:$0xff]
        %v216 = vld [vmem:[%s1 + $0x50] sm:$0xff]
        %v217 = vld [vmem:[%s1 + $0x58] sm:$0xff]
        %v218 = vld [vmem:[%s1 + $0x60] sm:$0xff]
        %v219 = vld [vmem:[%s1 + $0x68] sm:$0xff]
        %v220 = vld [vmem:[%s1 + $0x70] sm:$0xff]
        %v221 = vld [vmem:[%s1 + $0x78] sm:$0xff]
        %v222 = vld [vmem:[%s1 + $0x80] sm:$0xff]
        %v223 = vld [vmem:[%s1 + $0x88] sm:$0xff]
        %v224 = vld [vmem:[%s1 + $0x90] sm:$0xff]
        %v225 = vld [vmem:[%s1 + $0x98] sm:$0xff]
        %v226 = vld [vmem:[%s1 + $0xa0] sm:$0xff]
        %v227 = vld [vmem:[%s1 + $0xa8] sm:$0xff]
        %v228 = vld [vmem:[%s1 + $0xb0] sm:$0xff]
        %v229 = vld [vmem:[%s1 + $0xb8] sm:$0xff]
        %v230 = vld [vmem:[%s1 + $0xc0] sm:$0xff]
        %v231 = vld [vmem:[%s1 + $0xc8] sm:$0xff]
        %v232 = vld [vmem:[%s1 + $0xd0] sm:$0xff]
        %v233 = vld [vmem:[%s1 + $0xd8] sm:$0xff]
        %v234 = vld [vmem:[%s1 + $0xe0] sm:$0xff]
        %v235 = vld [vmem:[%s1 + $0xe8] sm:$0xff]
        %v236 = vld [vmem:[%s1 + $0xf0] sm:$0xff]
        %v237 = vld [vmem:[%s1 + $0xf8] sm:$0xff]
        %v238 = vld [vmem:[%s1 + $0x100] sm:$0xff]
        %v239 = vld [vmem:[%s1 + $0x108] sm:$0xff]
        %v240 = vld [vmem:[%s1 + $0x110] sm:$0xff]
        %v241 = vld [vmem:[%s1 + $0x118] sm:$0xff]
        %v242 = vld [vmem:[%s1 + $0x120] sm:$0xff]
        %v243 = vld [vmem:[%s1 + $0x128] sm:$0xff]
        %v244 = vld [vmem:[%s1 + $0x130] sm:$0xff]
        %v245 = vld [vmem:[%s1 + $0x138] sm:$0xff]
        %v246 = vld [vmem:[%s1 + $0x140] sm:$0xff]
        %v247 = vld [vmem:[%s1 + $0x148] sm:$0xff]
        %v248 = vld [vmem:[%s1 + $0x150] sm:$0xff]
        %v249 = vld [vmem:[%s1 + $0x158] sm:$0xff]
        %v250 = vld [vmem:[%s1 + $0x160] sm:$0xff]
        %v251 = vld [vmem:[%s1 + $0x168] sm:$0xff]
        %v252 = vld [vmem:[%s1 + $0x170] sm:$0xff]
        %v253 = vld [vmem:[%s1 + $0x178] sm:$0xff]
        %v254 = vld [vmem:[%s1 + $0x180] sm:$0xff]
        %v255 = vld [vmem:[%s1 + $0x188] sm:$0xff]
        %v256 = vld [vmem:[%s1 + $0x190] sm:$0xff]
        %v257 = vld [vmem:[%s1 + $0x198] sm:$0xff]
        %v258 = vld [vmem:[%s1 + $0x1a0] sm:$0xff]
        %v259 = vld [vmem:[%s1 + $0x1a8] sm:$0xff]
        %v260 = vld [vmem:[%s1 + $0x1b0] sm:$0xff]
        %v261 = vld [vmem:[%s1 + $0x1b8] sm:$0xff]
        %v262 = vld [vmem:[%s1 + $0x1c0] sm:$0xff]
        %v263 = vld [vmem:[%s1 + $0x1c8] sm:$0xff]
        %v264 = vld [vmem:[%s1 + $0x1d0] sm:$0xff]
        %v265 = vld [vmem:[%s1 + $0x1d8] sm:$0xff]
        %v266 = vld [vmem:[%s1 + $0x1e0] sm:$0xff]
        %v267 = vld [vmem:[%s1 + $0x1e8] sm:$0xff]
        %v268 = vld [vmem:[%s1 + $0x1f0] sm:$0xff]
        %v269 = vld [vmem:[%s1 + $0x1f8] sm:$0xff]
        %v270 = vld [vmem:[%s1 + $0x200] sm:$0xff]
        %v271 = vld [vmem:[%s1 + $0x208] sm:$0xff]
        %v272 = vld [vmem:[%s1 + $0x210] sm:$0xff]
        %v273 = vld [vmem:[%s1 + $0x218] sm:$0xff]
        %v274 = vld [vmem:[%s1 + $0x220] sm:$0xff]
        %v275 = vld [vmem:[%s1 + $0x228] sm:$0xff]
        %v276 = vld [vmem:[%s1 + $0x230] sm:$0xff]
        %v277 = vld [vmem:[%s1 + $0x238] sm:$0xff]
        %v278 = vld [vmem:[%s1 + $0x240] sm:$0xff]
        %v279 = vld [vmem:[%s1 + $0x248] sm:$0xf]
        %v280 = vld [vmem:[%s2] sm:$0x1]
        %v282 = vperm.slane %v280, 0
        %vm284 = vcmask 621568
        %v286 = vsel %vm284, %v200, 0
        %v289 = vsel %vm284, %v205, 0
        %vm291 = vcmask 1043456
        %v293 = vsel %vm291, %v279, 0
        %295 = vmatpush.msra.mxu0 %v221
        %296 = vmatpush.msra.mxu0 %v220
        %297 = vmatpush.msra.mxu0 %v219
        %298 = vmatpush.msra.mxu0 %v218
        %299 = vmatpush.msra.mxu0 %v217
        %300 = vmatpush.msra.mxu0 %v216
        %301 = vmatpush.msra.mxu0 %v215
        %302 = vmatpush.msra.mxu0 %v214
        %303 = vmatpush.msra.mxu0 %v213
        %304 = vmatpush.msra.mxu0 %v212
        %305 = vmatpush.msra.mxu0 %v211
        %306 = vmatpush.msra.mxu0 %v210
        %307 = vmatpush.msra.mxu0 %v209
        %308 = vmatpush.msra.mxu0 %v208
        %309 = vmatpush.msra.mxu0 %v207
        %310 = vmatpush.msra.mxu0 %v206
        %311 = vmatmul.f32.gmra.mxu0 %v196
        %v312 = vpop.f32.mrf.mxu0
        %v313 = vadd.f32 %v282, %v312
        %314 = vmatmul.f32.gmra.mxu0 %v201
        %v315 = vpop.f32.mrf.mxu0
        %v316 = vadd.f32 %v282, %v315
        %317 = vdwg.mxu0
        %318 = vmatpush.msra.mxu0 %v237
        %319 = vmatpush.msra.mxu0 %v236
        %320 = vmatpush.msra.mxu0 %v235
        %321 = vmatpush.msra.mxu0 %v234
        %322 = vmatpush.msra.mxu0 %v233
        %323 = vmatpush.msra.mxu0 %v232
        %324 = vmatpush.msra.mxu0 %v231
        %325 = vmatpush.msra.mxu0 %v230
        %326 = vmatpush.msra.mxu0 %v229
        %327 = vmatpush.msra.mxu0 %v228
        %328 = vmatpush.msra.mxu0 %v227
        %329 = vmatpush.msra.mxu0 %v226
        %330 = vmatpush.msra.mxu0 %v225
        %331 = vmatpush.msra.mxu0 %v224
        %332 = vmatpush.msra.mxu0 %v223
        %333 = vmatpush.msra.mxu0 %v222
        %334 = vmatmul.f32.gmra.mxu0 %v197
        %v335 = vpop.f32.mrf.mxu0
        %v336 = vadd.f32 %v313, %v335
        %337 = vmatmul.f32.gmra.mxu0 %v202
        %v338 = vpop.f32.mrf.mxu0
        %v339 = vadd.f32 %v316, %v338
        %340 = vdwg.mxu0
        %341 = vmatpush.msra.mxu0 %v253
        %342 = vmatpush.msra.mxu0 %v252
        %343 = vmatpush.msra.mxu0 %v251
        %344 = vmatpush.msra.mxu0 %v250
        %345 = vmatpush.msra.mxu0 %v249
        %346 = vmatpush.msra.mxu0 %v248
        %347 = vmatpush.msra.mxu0 %v247
        %348 = vmatpush.msra.mxu0 %v246
        %349 = vmatpush.msra.mxu0 %v245
        %350 = vmatpush.msra.mxu0 %v244
        %351 = vmatpush.msra.mxu0 %v243
        %352 = vmatpush.msra.mxu0 %v242
        %353 = vmatpush.msra.mxu0 %v241
        %354 = vmatpush.msra.mxu0 %v240
        %355 = vmatpush.msra.mxu0 %v239
        %356 = vmatpush.msra.mxu0 %v238
        %357 = vmatmul.f32.gmra.mxu0 %v198
        %v358 = vpop.f32.mrf.mxu0
        %v359 = vadd.f32 %v336, %v358
        %360 = vmatmul.f32.gmra.mxu0 %v203
        %v361 = vpop.f32.mrf.mxu0
        %v362 = vadd.f32 %v339, %v361
        %363 = vdwg.mxu0
        %364 = vmatpush.msra.mxu0 %v269
        %365 = vmatpush.msra.mxu0 %v268
        %366 = vmatpush.msra.mxu0 %v267
        %367 = vmatpush.msra.mxu0 %v266
        %368 = vmatpush.msra.mxu0 %v265
        %369 = vmatpush.msra.mxu0 %v264
        %370 = vmatpush.msra.mxu0 %v263
        %371 = vmatpush.msra.mxu0 %v262
        %372 = vmatpush.msra.mxu0 %v261
        %373 = vmatpush.msra.mxu0 %v260
        %374 = vmatpush.msra.mxu0 %v259
        %375 = vmatpush.msra.mxu0 %v258
        %376 = vmatpush.msra.mxu0 %v257
        %377 = vmatpush.msra.mxu0 %v256
        %378 = vmatpush.msra.mxu0 %v255
        %379 = vmatpush.msra.mxu0 %v254
        %380 = vmatmul.f32.gmra.mxu0 %v199
        %v381 = vpop.f32.mrf.mxu0
        %v382 = vadd.f32 %v359, %v381
        %383 = vmatmul.f32.gmra.mxu0 %v204
        %v384 = vpop.f32.mrf.mxu0
        %v385 = vadd.f32 %v362, %v384
        %386 = vdwg.mxu0
        %387 = vmatpush.msra.mxu0 0.0
        %388 = vmatpush.msra.mxu0 0.0
        %389 = vmatpush.msra.mxu0 0.0
        %390 = vmatpush.msra.mxu0 0.0
        %391 = vmatpush.msra.mxu0 0.0
        %392 = vmatpush.msra.mxu0 0.0
        %393 = vmatpush.msra.mxu0 %v293
        %394 = vmatpush.msra.mxu0 %v278
        %395 = vmatpush.msra.mxu0 %v277
        %396 = vmatpush.msra.mxu0 %v276
        %397 = vmatpush.msra.mxu0 %v275
        %398 = vmatpush.msra.mxu0 %v274
        %399 = vmatpush.msra.mxu0 %v273
        %400 = vmatpush.msra.mxu0 %v272
        %401 = vmatpush.msra.mxu0 %v271
        %402 = vmatpush.msra.mxu0 %v270
        %403 = vmatmul.f32.gmra.mxu0 %v286
        %v404 = vpop.f32.mrf.mxu0
        %v405 = vadd.f32 %v382, %v404
        %406 = vmatmul.f32.gmra.mxu0 %v289
        %v407 = vpop.f32.mrf.mxu0
        %v408 = vadd.f32 %v385, %v407
        %409 = vdwg.mxu0
        %v410 = vld [vmem:[%s3] sm:$0xff]
        %v411 = vld [vmem:[%s3 + $0x8] sm:$0xff]
        %v412 = vadd.f32 %v405, %v410
        %v413 = vadd.f32 %v408, %v411
        %vm414 = vcmask 523264
        %415 = vst.msk [vmem:[%s190] sm:$0xff] %vm414, %v412
        %416 = vst.msk [vmem:[%s190 + $0x8] sm:$0xff] %vm414, %v413
        %s417 = sand.u32 %s115, 1
        %s418 = scalar_lea.sflag [#allocation3], %s417
        %s419 = sand.u32 %s115, 1
        %s420 = smul.addr %s419, 16
        %s421 = scalar_lea.vmem [#allocation2], %s420
        // Predicated region
        $region37: #{tpu_custom_call.1} parent=35 // pred_check
          %p422 = pneg %p125
        $region38: #{tpu_custom_call.1} parent=35 // pred_check_branch
          %424 = sbr.rel (%p422) target = $region40
        $region39: #{tpu_custom_call.1} parent=35 // pred_region
          %426 = vsyncadd %s418, 0
          %s427 = smul.addr %s18, 2
          %s428 = smul.addr %s427, 8
          %s429 = scalar_lea.hbm %s4, %s428
          %s430 = sshll.u32 %s421, 4
          %s431 = int_to_ptr.vmem [resolvable:$true] %s430
          %s432 = sshll.u32 %s429, 4
          %s433 = int_to_ptr.hbm [resolvable:$true] %s432
          %438 = dma.vmem_to_hbm [thread:$0]  %s431, 256, %s433, %s418, 128, 128, 8
        $region40: #{tpu_custom_call.1} parent=35 // pred_fallthru
          _
      $region36: #{tpu_custom_call.1} parent=5 // pred_fallthru
        _
      %p439 = scmp.le.s32.totalorder 2, %s13
      // Predicated region
      $region41: #{tpu_custom_call.1} parent=5 // pred_check
        %p440 = pneg %p439
      $region42: #{tpu_custom_call.1} parent=5 // pred_check_branch
        %442 = sbr.rel (%p440) target = $region44
      $region43: #{tpu_custom_call.1} parent=5 // pred_region
        %s443 = ssub.s32 %s13, 2
        // Predicated region
        $region45: #{tpu_custom_call.1} parent=43 // pred_check
          %p444 = pneg %p131
        $region46: #{tpu_custom_call.1} parent=43 // pred_check_branch
          %446 = sbr.rel (%p444) target = $region48
        $region47: #{tpu_custom_call.1} parent=43 // pred_region
          %s447 = sand.u32 %s116, 1
          %s448 = scalar_lea.sflag [#allocation3], %s447
          %s449 = sand.u32 %s116, 1
          %s450 = smul.addr %s449, 16
          %s451 = scalar_lea.vmem [#allocation2], %s450
          %453 = dma.done %s448, 256
        $region48: #{tpu_custom_call.1} parent=43 // pred_fallthru
          _
      $region44: #{tpu_custom_call.1} parent=5 // pred_fallthru
        _
    $region6: #{tpu_custom_call.1} parent=1 // loop_footer
      %s17 = sadd.s32 1, %s13
    $region7: #{tpu_custom_call.1} parent=1 // loop_footer_branch
      %12 = sbr.rel target = $region3
    $region8: #{tpu_custom_call.1} parent=1 // loop_exit
      _
    %454 = vsyncpa [#allocation3], 1
    %s455 = scalar_lea.sflag [#allocation3], 1
    %456 = vsyncpa %s455, 1

</llo_original>
